<compile_context>
chip_gen: v7x
topology: tpu7x:2x2x1
jax: 0.10.0
libtpu: 0.0.40
codegen_flags: <defaults>
</compile_context>

<pallas_src>
import functools

import jax
import jax.numpy as jnp
from jax import lax
from jax.experimental import pallas as pl
from jax.experimental.pallas import tpu as pltpu

_LANE = 128
_SUBLANE = 8


def _round_up(n, m):
    return ((n + m - 1) // m) * m


def _tpu_info():
    """Returns (physical_vmem_bytes, multi_tensorcore_chip) with safe fallbacks."""
    vmem_bytes = 64 * 1024 * 1024          # conservative: v7x per-TC physical
    multi_tc = False
    try:
        vmem_bytes = int(pltpu.get_tpu_info().vmem_capacity_bytes)
    except Exception:
        pass
    try:
        kind = jax.devices()[0].device_kind.lower()
        multi_tc = ("v7" in kind) or ("7x" in kind)   # 2 TC/chip only on v7x
    except Exception:
        pass
    return vmem_bytes, multi_tc


# ----------------------------------------------------------------------------
# Kernel: fused MLP forward for one batch tile.
# All weights/biases live fully in VMEM (single-buffered, grid-invariant);
# the batch dim is tiled over a single "parallel" grid axis.
# ----------------------------------------------------------------------------
def _translator_kernel(num_hidden_layer, x_ref, *refs):
    o_ref = refs[-1]
    if num_hidden_layer > 0:
        w_in, b_in, wh_ref, bh_ref, w_out, b_out = refs[:-1]
    else:
        w_in, b_in, w_out, b_out = refs[:-1]

    # Input layer: Linear -> ReLU (Dropout == identity in eval mode).
    # x is f32 in HBM (no host pad/cast pass); cast to bf16 here for the MXU,
    # accumulate in f32, bias/ReLU stay f32.
    x = x_ref[...].astype(jnp.bfloat16)
    h = jnp.dot(x, w_in[...], preferred_element_type=jnp.float32)
    h = jnp.maximum(h + b_in[...], 0.0)

    # Hidden layers: (Linear -> ReLU -> Dropout) * num_hidden_layer.
    if num_hidden_layer > 0:
        def body(i, h):
            hh = jnp.dot(h.astype(jnp.bfloat16), wh_ref[i],
                         preferred_element_type=jnp.float32)
            return jnp.maximum(hh + bh_ref[i], 0.0)
        # TODO(synk): training-mode dropout (pltpu.prng_random_bits mask) not
        # implemented; forward matches model.eval() semantics (identity).
        h = lax.fori_loop(0, num_hidden_layer, body, h,
                          unroll=num_hidden_layer <= 4)

    # Output layer: Linear, no activation. Written at natural context_dim.
    out = jnp.dot(h.astype(jnp.bfloat16), w_out[...],
                  preferred_element_type=jnp.float32) + b_out[...]
    o_ref[...] = out.astype(o_ref.dtype)


def translator_forward(x, params, *, num_hidden_layer, dropout_p=0.0,
                       training=False, batch_tile=512,
                       small_batch_fallback=True, small_batch_threshold=64):
    """x: (B, context_dim). params: flat list of (W, b), W stored as (in, out)."""
    if training and dropout_p > 0.0:
        # TODO(synk): training-mode dropout not implemented in the kernel.
        raise NotImplementedError("Translator kernel implements eval-mode forward only.")

    B, context_dim = x.shape
    num_hidden_neuron = params[0].shape[1]
    hid_p = _round_up(num_hidden_neuron, _LANE)   # lane-dense hidden width

    # Small-batch fast path: at tiny B the pallas_call fixed overhead and the
    # pad/slice passes dominate; a fused XLA dot chain is faster.
    if small_batch_fallback and B < small_batch_threshold:
        return translator_ref_f32(x, params, num_hidden_layer)

    # ---- pack parameters (bf16 weights, f32 biases); pad only output/lane
    # dims of the hidden width, never the contraction dims of x / w_out cols.
    def _b(b):
        return jnp.asarray(b, jnp.float32).reshape(1, -1)

    w_in = jnp.zeros((context_dim, hid_p), jnp.bfloat16)
    w_in = w_in.at[:, :num_hidden_neuron].set(params[0].astype(jnp.bfloat16))
    b_in = jnp.zeros((1, hid_p), jnp.float32)
    b_in = b_in.at[:, :num_hidden_neuron].set(_b(params[1]))

    packed = [w_in, b_in]
    if num_hidden_layer > 0:
        wh = jnp.zeros((num_hidden_layer, hid_p, hid_p), jnp.bfloat16)
        bh = jnp.zeros((num_hidden_layer, 1, hid_p), jnp.float32)
        for i in range(num_hidden_layer):
            wh = wh.at[i, :num_hidden_neuron, :num_hidden_neuron].set(
                params[2 + 2 * i].astype(jnp.bfloat16))
            bh = bh.at[i, :, :num_hidden_neuron].set(_b(params[3 + 2 * i]))
        packed += [wh, bh]

    w_out = jnp.zeros((hid_p, context_dim), jnp.bfloat16)
    w_out = w_out.at[:num_hidden_neuron, :].set(params[-2].astype(jnp.bfloat16))
    b_out = _b(params[-1])                         # (1, context_dim), unpadded
    packed += [w_out, b_out]

    # ---- batch tiling (generation-aware).
    vmem_physical, multi_tc = _tpu_info()
    b_aligned = _round_up(B, _SUBLANE)
    bt = _round_up(min(batch_tile, b_aligned), _SUBLANE)
    # Only on v7x (2 TCs) is a forced >=2-step split useful; on v5e/v6e it is
    # pure serial overhead.
    if multi_tc and b_aligned >= 2 * _SUBLANE and pl.cdiv(b_aligned, bt) < 2:
        bt = _round_up(pl.cdiv(b_aligned, 2), _SUBLANE)
    B_pad = _round_up(B, bt)

    # Pad only the batch dim (cheap) -- no lane padding, no dtype cast pass.
    x_in = x if B_pad == B else jnp.pad(x, ((0, B_pad - B), (0, 0)))

    x_spec = pl.BlockSpec((bt, context_dim), lambda i: (i, 0))
    out_spec = pl.BlockSpec((bt, context_dim), lambda i: (i, 0))

    # ---- VMEM budget: params (x2 upper bound in case single-buffering is
    # unavailable) + double-buffered I/O tiles + bounded per-layer live set.
    param_bytes = sum(int(p.size) * p.dtype.itemsize for p in packed)
    io_bytes = 2 * 2 * bt * context_dim * 4                      # x/out, 2-buffered
    act_bytes = bt * hid_p * (4 + 4 + 2) + bt * max(context_dim, hid_p) * 4
    vmem_limit = int(1.5 * (2 * param_bytes + io_bytes + act_bytes)) + (8 << 20)
    vmem_limit = max(8 << 20, min(vmem_limit, int(0.8 * vmem_physical)))

    kernel = functools.partial(_translator_kernel, num_hidden_layer)

    def _build(single_buffer_params):
        def pspec(p):
            idx = lambda i, r=p.ndim: (0,) * r          # grid-invariant
            if single_buffer_params:
                return pl.BlockSpec(p.shape, idx, pipeline_mode=pl.Buffered(1))
            return pl.BlockSpec(p.shape, idx)

        return pl.pallas_call(
            kernel,
            out_shape=jax.ShapeDtypeStruct((B_pad, context_dim), jnp.float32),
            grid_spec=pltpu.PrefetchScalarGridSpec(
                num_scalar_prefetch=0,
                grid=(B_pad // bt,),
                in_specs=[x_spec] + [pspec(p) for p in packed],
                out_specs=out_spec,
            ),
            compiler_params=pltpu.CompilerParams(
                dimension_semantics=("parallel",),
                vmem_limit_bytes=vmem_limit,
            ),
        )

    # Prefer single-buffered grid-invariant params; fall back if the installed
    # JAX/Mosaic does not accept pipeline_mode on a top-level BlockSpec.
    try:
        if hasattr(pl, "Buffered"):
            out_pad = _build(True)(x_in, *packed)
        else:
            out_pad = _build(False)(x_in, *packed)
    except Exception:
        out_pad = _build(False)(x_in, *packed)

    return out_pad[:B] if B_pad != B else out_pad


# ----------------------------------------------------------------------------
# Deterministic parameter init (PyTorch Linear-style uniform(-1/sqrt(in), +)).
# Stored as (in, out) so the kernel computes y = x @ W + b.
# ----------------------------------------------------------------------------
def init_translator_params(key, context_dim, num_hidden_layer, num_hidden_neuron):
    params = []

    def linear(key, fan_in, fan_out):
        k_w, k_b = jax.random.split(key)
        bound = 1.0 / jnp.sqrt(fan_in)
        w = jax.random.uniform(k_w, (fan_in, fan_out), jnp.float32, -bound, bound)
        b = jax.random.uniform(k_b, (1, fan_out), jnp.float32, -bound, bound)
        return w, b

    keys = jax.random.split(key, num_hidden_layer + 2)
    w, b = linear(keys[0], context_dim, num_hidden_neuron)
    params += [w, b]
    for i in range(num_hidden_layer):
        w, b = linear(keys[1 + i], num_hidden_neuron, num_hidden_neuron)
        params += [w, b]
    w, b = linear(keys[-1], num_hidden_neuron, context_dim)
    params += [w, b]
    return params


# ----------------------------------------------------------------------------
# Pure-JAX references.
# ----------------------------------------------------------------------------
def translator_ref_f32(x, params, num_hidden_layer):
    h = jnp.maximum(x @ params[0] + params[1], 0.0)
    for i in range(num_hidden_layer):
        h = jnp.maximum(h @ params[2 + 2 * i] + params[3 + 2 * i], 0.0)
    return h @ params[-2] + params[-1]


def translator_ref_bf16(x, params, num_hidden_layer):
    # Mirrors the kernel's numerics: bf16 operands, f32 accumulate, f32 bias/ReLU.
    def lin(h, w, b):
        return jnp.dot(h.astype(jnp.bfloat16), w.astype(jnp.bfloat16),
                       preferred_element_type=jnp.float32) + b

    h = jnp.maximum(lin(x, params[0], params[1]), 0.0)
    for i in range(num_hidden_layer):
        h = jnp.maximum(lin(h, params[2 + 2 * i], params[3 + 2 * i]), 0.0)
    return lin(h, params[-2], params[-1])


def _check(out, x, params, num_hidden_layer, tag):
    ref_bf16 = translator_ref_bf16(x, params, num_hidden_layer)
    assert jnp.allclose(out, ref_bf16, atol=2e-3, rtol=2e-3), \
        f"{tag}: mismatch vs bf16-matched reference"
    ref_f32 = translator_ref_f32(x, params, num_hidden_layer)
    assert jnp.allclose(out, ref_f32, atol=5e-2, rtol=5e-2), \
        f"{tag}: mismatch vs f32 reference"


if __name__ == "__main__":
    key = jax.random.PRNGKey(0)

    # --- Test 1: tiny single-tile case (batch=8, ctx=32, 2 hidden x 64). ---
    k1, k2, k3, k4 = jax.random.split(key, 4)
    batch, context_dim, L, H = 8, 32, 2, 64
    x = jax.random.normal(k1, (batch, context_dim), jnp.float32)
    params = init_translator_params(k2, context_dim, L, H)
    out = translator_forward(x, params, num_hidden_layer=L,
                             small_batch_fallback=False)   # force Pallas path
    out = jax.block_until_ready(out)
    assert out.shape == (batch, context_dim)
    _check(out, x, params, L, "test1")

    # --- Test 2: multi-grid-step case (batch padding + tiling, 3 hidden). ---
    batch2, context_dim2, L2, H2 = 40, 32, 3, 96
    x2 = jax.random.normal(k3, (batch2, context_dim2), jnp.float32)
    params2 = init_translator_params(k4, context_dim2, L2, H2)
    out2 = translator_forward(x2, params2, num_hidden_layer=L2,
                              batch_tile=16,                # -> 3 grid steps
                              small_batch_fallback=False)
    out2 = jax.block_until_ready(out2)
    assert out2.shape == (batch2, context_dim2)
    _check(out2, x2, params2, L2, "test2")

    print("KERNEL_OK")
</pallas_src>

<mosaic_0001>
module attributes {stable_mosaic.version = 11 : i64} {
  func.func @_translator_kernel(%arg0: i32, %arg1: memref<8x32xf32, #tpu.memory_space<vmem>>, %arg2: memref<32x128xbf16, #tpu.memory_space<vmem>>, %arg3: memref<1x128xf32, #tpu.memory_space<vmem>>, %arg4: memref<2x128x128xbf16, #tpu.memory_space<vmem>>, %arg5: memref<2x1x128xf32, #tpu.memory_space<vmem>>, %arg6: memref<128x32xbf16, #tpu.memory_space<vmem>>, %arg7: memref<1x32xf32, #tpu.memory_space<vmem>>, %arg8: memref<8x32xf32, #tpu.memory_space<vmem>>) attributes {dimension_semantics = [#tpu.dimension_semantics<parallel>], iteration_bounds = array<i64: 1>, scalar_prefetch = 0 : i64, scratch_operands = 0 : i64, tpu.core_type = #tpu.core_type<tc>, window_params = [{transform_indices = @transform_0, window_bounds = array<i64: 8, 32>}, {pipeline_mode = #tpu.pipeline_mode<synchronous>, transform_indices = @transform_1, window_bounds = array<i64: 32, 128>}, {pipeline_mode = #tpu.pipeline_mode<synchronous>, transform_indices = @transform_2, window_bounds = array<i64: 1, 128>}, {pipeline_mode = #tpu.pipeline_mode<synchronous>, transform_indices = @transform_3, window_bounds = array<i64: 2, 128, 128>}, {pipeline_mode = #tpu.pipeline_mode<synchronous>, transform_indices = @transform_4, window_bounds = array<i64: 2, 1, 128>}, {pipeline_mode = #tpu.pipeline_mode<synchronous>, transform_indices = @transform_5, window_bounds = array<i64: 128, 32>}, {pipeline_mode = #tpu.pipeline_mode<synchronous>, transform_indices = @transform_6, window_bounds = array<i64: 1, 32>}, {transform_indices = @transform_7, window_bounds = array<i64: 8, 32>}]} {
    %c0 = arith.constant 0 : index
    %c0_0 = arith.constant 0 : index
    %0 = vector.load %arg1[%c0, %c0_0] : memref<8x32xf32, #tpu.memory_space<vmem>>, vector<8x32xf32>
    %1 = arith.truncf %0 : vector<8x32xf32> to vector<8x32xbf16>
    %c0_1 = arith.constant 0 : index
    %c0_2 = arith.constant 0 : index
    %2 = vector.load %arg2[%c0_1, %c0_2] : memref<32x128xbf16, #tpu.memory_space<vmem>>, vector<32x128xbf16>
    %cst = arith.constant dense<0.000000e+00> : vector<8x128xf32>
    %3 = tpu.matmul %1, %2, %cst {dimension_numbers = #tpu.dot_dimension_numbers<[1], [0], [0], [1], [0, 0, 1, 1], [], []>} : vector<8x32xbf16>, vector<32x128xbf16>, vector<8x128xf32> -> vector<8x128xf32>
    %c0_3 = arith.constant 0 : index
    %c0_4 = arith.constant 0 : index
    %4 = vector.load %arg3[%c0_3, %c0_4] : memref<1x128xf32, #tpu.memory_space<vmem>>, vector<1x128xf32>
    %5 = vector.broadcast %4 : vector<1x128xf32> to vector<8x128xf32>
    %6 = arith.addf %3, %5 : vector<8x128xf32>
    %cst_5 = arith.constant 0.000000e+00 : f32
    %7 = vector.broadcast %cst_5 : f32 to vector<8x128xf32>
    %8 = arith.maximumf %6, %7 : vector<8x128xf32>
    %c0_i32 = arith.constant 0 : i32
    %9 = arith.truncf %8 : vector<8x128xf32> to vector<8x128xbf16>
    %10 = arith.index_cast %c0_i32 : i32 to index
    %c0_6 = arith.constant 0 : index
    %c0_7 = arith.constant 0 : index
    %11 = vector.load %arg4[%10, %c0_6, %c0_7] : memref<2x128x128xbf16, #tpu.memory_space<vmem>>, vector<1x128x128xbf16>
    %12 = vector.shape_cast %11 : vector<1x128x128xbf16> to vector<128x128xbf16>
    %cst_8 = arith.constant dense<0.000000e+00> : vector<8x128xf32>
    %13 = tpu.matmul %9, %12, %cst_8 {dimension_numbers = #tpu.dot_dimension_numbers<[1], [0], [0], [1], [0, 0, 1, 1], [], []>} : vector<8x128xbf16>, vector<128x128xbf16>, vector<8x128xf32> -> vector<8x128xf32>
    %14 = arith.index_cast %c0_i32 : i32 to index
    %c0_9 = arith.constant 0 : index
    %c0_10 = arith.constant 0 : index
    %15 = vector.load %arg5[%14, %c0_9, %c0_10] : memref<2x1x128xf32, #tpu.memory_space<vmem>>, vector<1x1x128xf32>
    %16 = vector.shape_cast %15 : vector<1x1x128xf32> to vector<1x128xf32>
    %17 = vector.broadcast %16 : vector<1x128xf32> to vector<8x128xf32>
    %18 = arith.addf %13, %17 : vector<8x128xf32>
    %cst_11 = arith.constant 0.000000e+00 : f32
    %19 = vector.broadcast %cst_11 : f32 to vector<8x128xf32>
    %20 = arith.maximumf %18, %19 : vector<8x128xf32>
    %c1_i32 = arith.constant 1 : i32
    %21 = arith.truncf %20 : vector<8x128xf32> to vector<8x128xbf16>
    %22 = arith.index_cast %c1_i32 : i32 to index
    %c0_12 = arith.constant 0 : index
    %c0_13 = arith.constant 0 : index
    %23 = vector.load %arg4[%22, %c0_12, %c0_13] : memref<2x128x128xbf16, #tpu.memory_space<vmem>>, vector<1x128x128xbf16>
    %24 = vector.shape_cast %23 : vector<1x128x128xbf16> to vector<128x128xbf16>
    %cst_14 = arith.constant dense<0.000000e+00> : vector<8x128xf32>
    %25 = tpu.matmul %21, %24, %cst_14 {dimension_numbers = #tpu.dot_dimension_numbers<[1], [0], [0], [1], [0, 0, 1, 1], [], []>} : vector<8x128xbf16>, vector<128x128xbf16>, vector<8x128xf32> -> vector<8x128xf32>
    %26 = arith.index_cast %c1_i32 : i32 to index
    %c0_15 = arith.constant 0 : index
    %c0_16 = arith.constant 0 : index
    %27 = vector.load %arg5[%26, %c0_15, %c0_16] : memref<2x1x128xf32, #tpu.memory_space<vmem>>, vector<1x1x128xf32>
    %28 = vector.shape_cast %27 : vector<1x1x128xf32> to vector<1x128xf32>
    %29 = vector.broadcast %28 : vector<1x128xf32> to vector<8x128xf32>
    %30 = arith.addf %25, %29 : vector<8x128xf32>
    %cst_17 = arith.constant 0.000000e+00 : f32
    %31 = vector.broadcast %cst_17 : f32 to vector<8x128xf32>
    %32 = arith.maximumf %30, %31 : vector<8x128xf32>
    %c2_i32 = arith.constant 2 : i32
    %33 = arith.truncf %32 : vector<8x128xf32> to vector<8x128xbf16>
    %c0_18 = arith.constant 0 : index
    %c0_19 = arith.constant 0 : index
    %34 = vector.load %arg6[%c0_18, %c0_19] : memref<128x32xbf16, #tpu.memory_space<vmem>>, vector<128x32xbf16>
    %cst_20 = arith.constant dense<0.000000e+00> : vector<8x32xf32>
    %35 = tpu.matmul %33, %34, %cst_20 {dimension_numbers = #tpu.dot_dimension_numbers<[1], [0], [0], [1], [0, 0, 1, 1], [], []>} : vector<8x128xbf16>, vector<128x32xbf16>, vector<8x32xf32> -> vector<8x32xf32>
    %c0_21 = arith.constant 0 : index
    %c0_22 = arith.constant 0 : index
    %36 = vector.load %arg7[%c0_21, %c0_22] : memref<1x32xf32, #tpu.memory_space<vmem>>, vector<1x32xf32>
    %37 = vector.broadcast %36 : vector<1x32xf32> to vector<8x32xf32>
    %38 = arith.addf %35, %37 : vector<8x32xf32>
    %c0_23 = arith.constant 0 : index
    %c0_24 = arith.constant 0 : index
    %39 = vector.load %arg8[%c0_23, %c0_24] : memref<8x32xf32, #tpu.memory_space<vmem>>, vector<8x32xf32>
    tpu.vector_store %arg8[%c0_23, %c0_24], %38 {strides = array<i32>} : memref<8x32xf32, #tpu.memory_space<vmem>>, vector<8x32xf32>,
    return
  }
  func.func @transform_0(%arg0: i32) -> (i32, i32) {
    %c0_i32 = arith.constant 0 : i32
    %c0_i32_0 = arith.constant 0 : i32
    return %arg0, %c0_i32 : i32, i32
  }
  func.func @transform_1(%arg0: i32) -> (i32, i32) {
    %c0_i32 = arith.constant 0 : i32
    %c0_i32_0 = arith.constant 0 : i32
    %c0_i32_1 = arith.constant 0 : i32
    return %c0_i32, %c0_i32_0 : i32, i32
  }
  func.func @transform_2(%arg0: i32) -> (i32, i32) {
    %c0_i32 = arith.constant 0 : i32
    %c0_i32_0 = arith.constant 0 : i32
    %c0_i32_1 = arith.constant 0 : i32
    return %c0_i32, %c0_i32_0 : i32, i32
  }
  func.func @transform_3(%arg0: i32) -> (i32, i32, i32) {
    %c0_i32 = arith.constant 0 : i32
    %c0_i32_0 = arith.constant 0 : i32
    %c0_i32_1 = arith.constant 0 : i32
    %c0_i32_2 = arith.constant 0 : i32
    return %c0_i32, %c0_i32_0, %c0_i32_1 : i32, i32, i32
  }
  func.func @transform_4(%arg0: i32) -> (i32, i32, i32) {
    %c0_i32 = arith.constant 0 : i32
    %c0_i32_0 = arith.constant 0 : i32
    %c0_i32_1 = arith.constant 0 : i32
    %c0_i32_2 = arith.constant 0 : i32
    return %c0_i32, %c0_i32_0, %c0_i32_1 : i32, i32, i32
  }
  func.func @transform_5(%arg0: i32) -> (i32, i32) {
    %c0_i32 = arith.constant 0 : i32
    %c0_i32_0 = arith.constant 0 : i32
    %c0_i32_1 = arith.constant 0 : i32
    return %c0_i32, %c0_i32_0 : i32, i32
  }
  func.func @transform_6(%arg0: i32) -> (i32, i32) {
    %c0_i32 = arith.constant 0 : i32
    %c0_i32_0 = arith.constant 0 : i32
    %c0_i32_1 = arith.constant 0 : i32
    return %c0_i32, %c0_i32_0 : i32, i32
  }
  func.func @transform_7(%arg0: i32) -> (i32, i32) {
    %c0_i32 = arith.constant 0 : i32
    %c0_i32_0 = arith.constant 0 : i32
    return %arg0, %c0_i32 : i32, i32
  }
}

module attributes {stable_mosaic.version = 11 : i64} {
  func.func @_translator_kernel(%arg0: i32, %arg1: memref<8x32xf32, #tpu.memory_space<vmem>>, %arg2: memref<32x128xbf16, #tpu.memory_space<vmem>>, %arg3: memref<1x128xf32, #tpu.memory_space<vmem>>, %arg4: memref<2x128x128xbf16, #tpu.memory_space<vmem>>, %arg5: memref<2x1x128xf32, #tpu.memory_space<vmem>>, %arg6: memref<128x32xbf16, #tpu.memory_space<vmem>>, %arg7: memref<1x32xf32, #tpu.memory_space<vmem>>, %arg8: memref<8x32xf32, #tpu.memory_space<vmem>>) attributes {dimension_semantics = [#tpu.dimension_semantics<parallel>], iteration_bounds = array<i64: 1>, scalar_prefetch = 0 : i64, scratch_operands = 0 : i64, tpu.core_type = #tpu.core_type<tc>, window_params = [{transform_indices = @transform_0, window_bounds = array<i64: 8, 32>}, {pipeline_mode = #tpu.pipeline_mode<synchronous>, transform_indices = @transform_1, window_bounds = array<i64: 32, 128>}, {pipeline_mode = #tpu.pipeline_mode<synchronous>, transform_indices = @transform_2, window_bounds = array<i64: 1, 128>}, {pipeline_mode = #tpu.pipeline_mode<synchronous>, transform_indices = @transform_3, window_bounds = array<i64: 2, 128, 128>}, {pipeline_mode = #tpu.pipeline_mode<synchronous>, transform_indices = @transform_4, window_bounds = array<i64: 2, 1, 128>}, {pipeline_mode = #tpu.pipeline_mode<synchronous>, transform_indices = @transform_5, window_bounds = array<i64: 128, 32>}, {pipeline_mode = #tpu.pipeline_mode<synchronous>, transform_indices = @transform_6, window_bounds = array<i64: 1, 32>}, {transform_indices = @transform_7, window_bounds = array<i64: 8, 32>}]} {
    %c0 = arith.constant 0 : index
    %c0_0 = arith.constant 0 : index
    %0 = vector.load %arg1[%c0, %c0_0] : memref<8x32xf32, #tpu.memory_space<vmem>>, vector<8x32xf32>
    %1 = arith.truncf %0 : vector<8x32xf32> to vector<8x32xbf16>
    %c0_1 = arith.constant 0 : index
    %c0_2 = arith.constant 0 : index
    %2 = vector.load %arg2[%c0_1, %c0_2] : memref<32x128xbf16, #tpu.memory_space<vmem>>, vector<32x128xbf16>
    %cst = arith.constant dense<0.000000e+00> : vector<8x128xf32>
    %3 = tpu.matmul %1, %2, %cst {dimension_numbers = #tpu.dot_dimension_numbers<[1], [0], [0], [1], [0, 0, 1, 1], [], []>} : vector<8x32xbf16>, vector<32x128xbf16>, vector<8x128xf32> -> vector<8x128xf32>
    %c0_3 = arith.constant 0 : index
    %c0_4 = arith.constant 0 : index
    %4 = vector.load %arg3[%c0_3, %c0_4] : memref<1x128xf32, #tpu.memory_space<vmem>>, vector<1x128xf32>
    %5 = vector.broadcast %4 : vector<1x128xf32> to vector<8x128xf32>
    %6 = arith.addf %3, %5 : vector<8x128xf32>
    %cst_5 = arith.constant 0.000000e+00 : f32
    %7 = vector.broadcast %cst_5 : f32 to vector<8x128xf32>
    %8 = arith.maximumf %6, %7 : vector<8x128xf32>
    %c0_i32 = arith.constant 0 : i32
    %9 = arith.truncf %8 : vector<8x128xf32> to vector<8x128xbf16>
    %10 = arith.index_cast %c0_i32 : i32 to index
    %c0_6 = arith.constant 0 : index
    %c0_7 = arith.constant 0 : index
    %11 = vector.load %arg4[%10, %c0_6, %c0_7] : memref<2x128x128xbf16, #tpu.memory_space<vmem>>, vector<1x128x128xbf16>
    %12 = vector.shape_cast %11 : vector<1x128x128xbf16> to vector<128x128xbf16>
    %cst_8 = arith.constant dense<0.000000e+00> : vector<8x128xf32>
    %13 = tpu.matmul %9, %12, %cst_8 {dimension_numbers = #tpu.dot_dimension_numbers<[1], [0], [0], [1], [0, 0, 1, 1], [], []>} : vector<8x128xbf16>, vector<128x128xbf16>, vector<8x128xf32> -> vector<8x128xf32>
    %14 = arith.index_cast %c0_i32 : i32 to index
    %c0_9 = arith.constant 0 : index
    %c0_10 = arith.constant 0 : index
    %15 = vector.load %arg5[%14, %c0_9, %c0_10] : memref<2x1x128xf32, #tpu.memory_space<vmem>>, vector<1x1x128xf32>
    %16 = vector.shape_cast %15 : vector<1x1x128xf32> to vector<1x128xf32>
    %17 = vector.broadcast %16 : vector<1x128xf32> to vector<8x128xf32>
    %18 = arith.addf %13, %17 : vector<8x128xf32>
    %cst_11 = arith.constant 0.000000e+00 : f32
    %19 = vector.broadcast %cst_11 : f32 to vector<8x128xf32>
    %20 = arith.maximumf %18, %19 : vector<8x128xf32>
    %c1_i32 = arith.constant 1 : i32
    %21 = arith.truncf %20 : vector<8x128xf32> to vector<8x128xbf16>
    %22 = arith.index_cast %c1_i32 : i32 to index
    %c0_12 = arith.constant 0 : index
    %c0_13 = arith.constant 0 : index
    %23 = vector.load %arg4[%22, %c0_12, %c0_13] : memref<2x128x128xbf16, #tpu.memory_space<vmem>>, vector<1x128x128xbf16>
    %24 = vector.shape_cast %23 : vector<1x128x128xbf16> to vector<128x128xbf16>
    %cst_14 = arith.constant dense<0.000000e+00> : vector<8x128xf32>
    %25 = tpu.matmul %21, %24, %cst_14 {dimension_numbers = #tpu.dot_dimension_numbers<[1], [0], [0], [1], [0, 0, 1, 1], [], []>} : vector<8x128xbf16>, vector<128x128xbf16>, vector<8x128xf32> -> vector<8x128xf32>
    %26 = arith.index_cast %c1_i32 : i32 to index
    %c0_15 = arith.constant 0 : index
    %c0_16 = arith.constant 0 : index
    %27 = vector.load %arg5[%26, %c0_15, %c0_16] : memref<2x1x128xf32, #tpu.memory_space<vmem>>, vector<1x1x128xf32>
    %28 = vector.shape_cast %27 : vector<1x1x128xf32> to vector<1x128xf32>
    %29 = vector.broadcast %28 : vector<1x128xf32> to vector<8x128xf32>
    %30 = arith.addf %25, %29 : vector<8x128xf32>
    %cst_17 = arith.constant 0.000000e+00 : f32
    %31 = vector.broadcast %cst_17 : f32 to vector<8x128xf32>
    %32 = arith.maximumf %30, %31 : vector<8x128xf32>
    %c2_i32 = arith.constant 2 : i32
    %33 = arith.truncf %32 : vector<8x128xf32> to vector<8x128xbf16>
    %c0_18 = arith.constant 0 : index
    %c0_19 = arith.constant 0 : index
    %34 = vector.load %arg6[%c0_18, %c0_19] : memref<128x32xbf16, #tpu.memory_space<vmem>>, vector<128x32xbf16>
    %cst_20 = arith.constant dense<0.000000e+00> : vector<8x32xf32>
    %35 = tpu.matmul %33, %34, %cst_20 {dimension_numbers = #tpu.dot_dimension_numbers<[1], [0], [0], [1], [0, 0, 1, 1], [], []>} : vector<8x128xbf16>, vector<128x32xbf16>, vector<8x32xf32> -> vector<8x32xf32>
    %c0_21 = arith.constant 0 : index
    %c0_22 = arith.constant 0 : index
    %36 = vector.load %arg7[%c0_21, %c0_22] : memref<1x32xf32, #tpu.memory_space<vmem>>, vector<1x32xf32>
    %37 = vector.broadcast %36 : vector<1x32xf32> to vector<8x32xf32>
    %38 = arith.addf %35, %37 : vector<8x32xf32>
    %c0_23 = arith.constant 0 : index
    %c0_24 = arith.constant 0 : index
    %39 = vector.load %arg8[%c0_23, %c0_24] : memref<8x32xf32, #tpu.memory_space<vmem>>, vector<8x32xf32>
    tpu.vector_store %arg8[%c0_23, %c0_24], %38 {strides = array<i32>} : memref<8x32xf32, #tpu.memory_space<vmem>>, vector<8x32xf32>,
    return
  }
  func.func @transform_0(%arg0: i32) -> (i32, i32) {
    %c0_i32 = arith.constant 0 : i32
    %c0_i32_0 = arith.constant 0 : i32
    return %arg0, %c0_i32 : i32, i32
  }
  func.func @transform_1(%arg0: i32) -> (i32, i32) {
    %c0_i32 = arith.constant 0 : i32
    %c0_i32_0 = arith.constant 0 : i32
    %c0_i32_1 = arith.constant 0 : i32
    return %c0_i32, %c0_i32_0 : i32, i32
  }
  func.func @transform_2(%arg0: i32) -> (i32, i32) {
    %c0_i32 = arith.constant 0 : i32
    %c0_i32_0 = arith.constant 0 : i32
    %c0_i32_1 = arith.constant 0 : i32
    return %c0_i32, %c0_i32_0 : i32, i32
  }
  func.func @transform_3(%arg0: i32) -> (i32, i32, i32) {
    %c0_i32 = arith.constant 0 : i32
    %c0_i32_0 = arith.constant 0 : i32
    %c0_i32_1 = arith.constant 0 : i32
    %c0_i32_2 = arith.constant 0 : i32
    return %c0_i32, %c0_i32_0, %c0_i32_1 : i32, i32, i32
  }
  func.func @transform_4(%arg0: i32) -> (i32, i32, i32) {
    %c0_i32 = arith.constant 0 : i32
    %c0_i32_0 = arith.constant 0 : i32
    %c0_i32_1 = arith.constant 0 : i32
    %c0_i32_2 = arith.constant 0 : i32
    return %c0_i32, %c0_i32_0, %c0_i32_1 : i32, i32, i32
  }
  func.func @transform_5(%arg0: i32) -> (i32, i32) {
    %c0_i32 = arith.constant 0 : i32
    %c0_i32_0 = arith.constant 0 : i32
    %c0_i32_1 = arith.constant 0 : i32
    return %c0_i32, %c0_i32_0 : i32, i32
  }
  func.func @transform_6(%arg0: i32) -> (i32, i32) {
    %c0_i32 = arith.constant 0 : i32
    %c0_i32_0 = arith.constant 0 : i32
    %c0_i32_1 = arith.constant 0 : i32
    return %c0_i32, %c0_i32_0 : i32, i32
  }
  func.func @transform_7(%arg0: i32) -> (i32, i32) {
    %c0_i32 = arith.constant 0 : i32
    %c0_i32_0 = arith.constant 0 : i32
    return %arg0, %c0_i32 : i32, i32
  }
}

</mosaic_0001>

<llo_original>
// kernel: tpu_custom_call.1
$region0: #{tpu_custom_call.1}
  #allocation0 [shape = 'u32[]', space=smem, size = 0x4, offset = 0x4, fixed_abs, tag = 'smem constant byte address 0x4 - core index']
  #allocation1 [shape = 'u32[144,128]{1,0:T(1,128)}', space=vmem, size = 0x12000, scoped, tag = 'internal scratch']
  %s0 = inlined_call_operand.vmem [shape: f32[8,32], index: 0, kind: input, shape index: {}]
  %s1 = inlined_call_operand.vmem [shape: bf16[32,128], index: 1, kind: input, shape index: {}]
  %s2 = inlined_call_operand.vmem [shape: f32[1,128], index: 2, kind: input, shape index: {}]
  %s3 = inlined_call_operand.hbm [shape: bf16[2,128,128], index: 3, kind: input, shape index: {}]
  %s4 = inlined_call_operand.vmem [shape: f32[2,1,128], index: 4, kind: input, shape index: {}]
  %s5 = inlined_call_operand.vmem [shape: bf16[128,32], index: 5, kind: input, shape index: {}]
  %s6 = inlined_call_operand.vmem [shape: f32[1,32], index: 6, kind: input, shape index: {}]
  %s7 = inlined_call_operand.hbm [shape: f32[8,32], index: 7, kind: output, shape index: {}]
  %s8 = sld [smem:[#allocation0]]
  $region42: #{tpu_custom_call.1} parent=0
    _
  %s10 = ssub.s32 1, %s8
  %s11 = scalar_select 0, %s10, %s8
  $region1: #{tpu_custom_call.1} parent=0
    #allocation2 [shape = 'u8[65536]{0}', space=vmem, size = 0x10000, scoped, tag = 'input window, operand 3, single buffered']
    #allocation3 [shape = 's32[1]{0}', space=sflag, size = 0x4, scoped, tag = 'scoped memory for tpu_custom_call.1']
    #allocation4 [shape = 's32[1]{0}', space=sflag, size = 0x4, scoped, tag = 'scoped memory for tpu_custom_call.1']
    #allocation5 [shape = 'u8[4096]{0}', space=vmem, size = 0x1000, scoped, tag = 'output window, operand 0, single buffered']
    %12 = vsyncpa [#allocation3], 0
    %13 = vsyncpa [#allocation4], 0
    // Predicated region
    $region2: #{tpu_custom_call.1} parent=1 // pred_check
      _
    $region3: #{tpu_custom_call.1} parent=1 // pred_check_branch
      %15 = sbr.rel (0) target = $region5
    $region4: #{tpu_custom_call.1} parent=1 // pred_region
      _
    $region5: #{tpu_custom_call.1} parent=1 // pred_fallthru
      _
    // Predicated region
    $region6: #{tpu_custom_call.1} parent=1 // pred_check
      _
    $region7: #{tpu_custom_call.1} parent=1 // pred_check_branch
      %17 = sbr.rel (0) target = $region9
    $region8: #{tpu_custom_call.1} parent=1 // pred_region
      _
    $region9: #{tpu_custom_call.1} parent=1 // pred_fallthru
      _
    // Predicated region
    $region10: #{tpu_custom_call.1} parent=1 // pred_check
      _
    $region11: #{tpu_custom_call.1} parent=1 // pred_check_branch
      %19 = sbr.rel (0) target = $region13
    $region12: #{tpu_custom_call.1} parent=1 // pred_region
      _
    $region13: #{tpu_custom_call.1} parent=1 // pred_fallthru
      _
    // Predicated region
    $region14: #{tpu_custom_call.1} parent=1 // pred_check
      _
    $region15: #{tpu_custom_call.1} parent=1 // pred_check_branch
      %21 = sbr.rel (0) target = $region17
    $region16: #{tpu_custom_call.1} parent=1 // pred_region
      %s23 = ssub.s32 2048, 2048
      %24 = vsyncadd [#allocation3], %s23
      %s25 = sshll.u32 [#allocation2], 4
      %s26 = int_to_ptr.vmem [resolvable:$true] %s25
      %31 = dma.hbm_to_vmem [thread:$0]  %s3, 2048, %s26, [#allocation3], 64, 64, 4
    $region17: #{tpu_custom_call.1} parent=1 // pred_fallthru
      _
    // Predicated region
    $region18: #{tpu_custom_call.1} parent=1 // pred_check
      _
    $region19: #{tpu_custom_call.1} parent=1 // pred_check_branch
      %33 = sbr.rel (0) target = $region21
    $region20: #{tpu_custom_call.1} parent=1 // pred_region
      _
    $region21: #{tpu_custom_call.1} parent=1 // pred_fallthru
      _
    // Predicated region
    $region22: #{tpu_custom_call.1} parent=1 // pred_check
      _
    $region23: #{tpu_custom_call.1} parent=1 // pred_check_branch
      %35 = sbr.rel (0) target = $region25
    $region24: #{tpu_custom_call.1} parent=1 // pred_region
      _
    $region25: #{tpu_custom_call.1} parent=1 // pred_fallthru
      _
    // Predicated region
    $region26: #{tpu_custom_call.1} parent=1 // pred_check
      _
    $region27: #{tpu_custom_call.1} parent=1 // pred_check_branch
      %37 = sbr.rel (0) target = $region29
    $region28: #{tpu_custom_call.1} parent=1 // pred_region
      _
    $region29: #{tpu_custom_call.1} parent=1 // pred_fallthru
      _
    // Predicated region
    $region30: #{tpu_custom_call.1} parent=1 // pred_check
      _
    $region31: #{tpu_custom_call.1} parent=1 // pred_check_branch
      %39 = sbr.rel (0) target = $region33
    $region32: #{tpu_custom_call.1} parent=1 // pred_region
      %40 = dma.done [#allocation3], 2048
    $region33: #{tpu_custom_call.1} parent=1 // pred_fallthru
      _
    %v42 = vld [vmem:[%s0] sm:$0xff]
    %v43 = vpack.c.bf16 %v42, %v42
    %v44 = vld [vmem:[%s1] sm:$0xf]
    %v45 = vld [vmem:[%s1 + $0x4] sm:$0xf]
    %v46 = vld [vmem:[%s1 + $0x8] sm:$0xf]
    %v47 = vld [vmem:[%s1 + $0xc] sm:$0xf]
    %v48 = vld [vmem:[%s2] sm:$0x1]
    %v50 = vlaneseq
    %v51 = vshrl.u32 %v50, 7
    %v52 = vsub.s32 0, %v51
    %v53 = vrot.slane %v48, %v52
    %v59 = vunpack.c.l.b16 %v44
    %v60 = vunpack.c.l.b16 %v45
    %v61 = vunpack.c.l.b16 %v46
    %v62 = vunpack.c.l.b16 %v47
    %v63 = vpack.c.b16 %v60, %v59
    %v64 = vpack.c.b16 %v62, %v61
    %vm67 = vcmask 261120
    %v69 = vsel %vm67, %v43, 0
    %71 = vmatprep.subr.bf16.mxu0 0
    %72 = vmatpush1.bf16.msra.mxu0 %v63
    %73 = vmatprep.subr.bf16.mxu0 0
    %74 = vmatpush1.bf16.msra.mxu0 %v64
    %75 = vmatprep.subr.bf16.mxu0 0
    %76 = vmatpush1.bf16.msra.mxu0 0
    %77 = vmatprep.subr.bf16.mxu0 0
    %78 = vmatpush1.bf16.msra.mxu0 0
    %79 = vmatprep.subr.bf16.mxu0 0
    %80 = vmatpush1.bf16.msra.mxu0 0
    %81 = vmatprep.subr.bf16.mxu0 0
    %82 = vmatpush1.bf16.msra.mxu0 0
    %83 = vmatprep.subr.bf16.mxu0 0
    %84 = vmatpush1.bf16.msra.mxu0 0
    %85 = vmatprep.subr.bf16.mxu0 0
    %86 = vmatpush1.bf16.msra.mxu0 0
    %87 = vmatprep.subr.bf16.mxu0 0
    %88 = vmatpush1.bf16.msra.mxu0 0
    %89 = vmatprep.subr.bf16.mxu0 0
    %90 = vmatpush1.bf16.msra.mxu0 0
    %91 = vmatprep.subr.bf16.mxu0 0
    %92 = vmatpush1.bf16.msra.mxu0 0
    %93 = vmatprep.subr.bf16.mxu0 0
    %94 = vmatpush1.bf16.msra.mxu0 0
    %95 = vmatprep.subr.bf16.mxu0 0
    %96 = vmatpush1.bf16.msra.mxu0 0
    %97 = vmatprep.subr.bf16.mxu0 0
    %98 = vmatpush1.bf16.msra.mxu0 0
    %99 = vmatprep.subr.bf16.mxu0 0
    %100 = vmatpush1.bf16.msra.mxu0 0
    %101 = vmatprep.subr.bf16.mxu0 0
    %102 = vmatpush1.bf16.msra.mxu0 0
    %103 = vmatprep.mubr.bf16.mxu0 0
    %104 = vmatmul.mubr.bf16.gmra.mrb[0].mxu0 %v69
    %v105 = vpop.f32.mrb[0].mxu0
    %v106 = vadd.f32 %v53, %v105
    %v107 = vpop.f32.mrb[0].mxu0
    %v108 = vpop.f32.mrb[0].mxu0
    %v109 = vpop.f32.mrb[0].mxu0
    %110 = vdwg.mxu0
    %v111 = vmax.f32 %v106, 0.0
    %v112 = vpack.c.bf16 %v111, %v111
    %v113 = vld [vmem:[#allocation2] sm:$0xf]
    %v114 = vld [vmem:[#allocation2 + $0x4] sm:$0xf]
    %v115 = vld [vmem:[#allocation2 + $0x8] sm:$0xf]
    %v116 = vld [vmem:[#allocation2 + $0xc] sm:$0xf]
    %v117 = vld [vmem:[#allocation2 + $0x10] sm:$0xf]
    %v118 = vld [vmem:[#allocation2 + $0x14] sm:$0xf]
    %v119 = vld [vmem:[#allocation2 + $0x18] sm:$0xf]
    %v120 = vld [vmem:[#allocation2 + $0x1c] sm:$0xf]
    %v121 = vld [vmem:[#allocation2 + $0x20] sm:$0xf]
    %v122 = vld [vmem:[#allocation2 + $0x24] sm:$0xf]
    %v123 = vld [vmem:[#allocation2 + $0x28] sm:$0xf]
    %v124 = vld [vmem:[#allocation2 + $0x2c] sm:$0xf]
    %v125 = vld [vmem:[#allocation2 + $0x30] sm:$0xf]
    %v126 = vld [vmem:[#allocation2 + $0x34] sm:$0xf]
    %v127 = vld [vmem:[#allocation2 + $0x38] sm:$0xf]
    %v128 = vld [vmem:[#allocation2 + $0x3c] sm:$0xf]
    %v129 = vld [vmem:[%s4] sm:$0x1]
    %v131 = vlaneseq
    %v132 = vshrl.u32 %v131, 7
    %v133 = vsub.s32 0, %v132
    %v134 = vrot.slane %v129, %v133
    %v152 = vunpack.c.l.b16 %v113
    %v153 = vunpack.c.l.b16 %v114
    %v154 = vunpack.c.l.b16 %v115
    %v155 = vunpack.c.l.b16 %v116
    %v156 = vunpack.c.l.b16 %v117
    %v157 = vunpack.c.l.b16 %v118
    %v158 = vunpack.c.l.b16 %v119
    %v159 = vunpack.c.l.b16 %v120
    %v160 = vunpack.c.l.b16 %v121
    %v161 = vunpack.c.l.b16 %v122
    %v162 = vunpack.c.l.b16 %v123
    %v163 = vunpack.c.l.b16 %v124
    %v164 = vunpack.c.l.b16 %v125
    %v165 = vunpack.c.l.b16 %v126
    %v166 = vunpack.c.l.b16 %v127
    %v167 = vunpack.c.l.b16 %v128
    %v168 = vpack.c.b16 %v153, %v152
    %v169 = vpack.c.b16 %v155, %v154
    %v170 = vpack.c.b16 %v157, %v156
    %v171 = vpack.c.b16 %v159, %v158
    %v172 = vpack.c.b16 %v161, %v160
    %v173 = vpack.c.b16 %v163, %v162
    %v174 = vpack.c.b16 %v165, %v164
    %v175 = vpack.c.b16 %v167, %v166
    %184 = vmatprep.subr.bf16.mxu0 0
    %185 = vmatpush1.bf16.msra.mxu0 %v168
    %186 = vmatprep.subr.bf16.mxu0 0
    %187 = vmatpush1.bf16.msra.mxu0 %v169
    %188 = vmatprep.subr.bf16.mxu0 0
    %189 = vmatpush1.bf16.msra.mxu0 %v170
    %190 = vmatprep.subr.bf16.mxu0 0
    %191 = vmatpush1.bf16.msra.mxu0 %v171
    %192 = vmatprep.subr.bf16.mxu0 0
    %193 = vmatpush1.bf16.msra.mxu0 %v172
    %194 = vmatprep.subr.bf16.mxu0 0
    %195 = vmatpush1.bf16.msra.mxu0 %v173
    %196 = vmatprep.subr.bf16.mxu0 0
    %197 = vmatpush1.bf16.msra.mxu0 %v174
    %198 = vmatprep.subr.bf16.mxu0 0
    %199 = vmatpush1.bf16.msra.mxu0 %v175
    %200 = vmatprep.subr.bf16.mxu0 0
    %201 = vmatpush1.bf16.msra.mxu0 0
    %202 = vmatprep.subr.bf16.mxu0 0
    %203 = vmatpush1.bf16.msra.mxu0 0
    %204 = vmatprep.subr.bf16.mxu0 0
    %205 = vmatpush1.bf16.msra.mxu0 0
    %206 = vmatprep.subr.bf16.mxu0 0
    %207 = vmatpush1.bf16.msra.mxu0 0
    %208 = vmatprep.subr.bf16.mxu0 0
    %209 = vmatpush1.bf16.msra.mxu0 0
    %210 = vmatprep.subr.bf16.mxu0 0
    %211 = vmatpush1.bf16.msra.mxu0 0
    %212 = vmatprep.subr.bf16.mxu0 0
    %213 = vmatpush1.bf16.msra.mxu0 0
    %214 = vmatprep.subr.bf16.mxu0 0
    %215 = vmatpush1.bf16.msra.mxu0 0
    %216 = vmatprep.mubr.bf16.mxu0 0
    %217 = vmatmul.mubr.bf16.gmra.mrb[0].mxu0 %v112
    %v218 = vpop.f32.mrb[0].mxu0
    %v219 = vadd.f32 %v134, %v218
    %v220 = vpop.f32.mrb[0].mxu0
    %v221 = vpop.f32.mrb[0].mxu0
    %v222 = vpop.f32.mrb[0].mxu0
    %223 = vdwg.mxu0
    %v224 = vmax.f32 %v219, 0.0
    %v225 = vpack.c.bf16 %v224, %v224
    %s226 = scalar_lea.vmem [#allocation2], 64
    %v227 = vld [vmem:[%s226] sm:$0xf]
    %v228 = vld [vmem:[%s226 + $0x4] sm:$0xf]
    %v229 = vld [vmem:[%s226 + $0x8] sm:$0xf]
    %v230 = vld [vmem:[%s226 + $0xc] sm:$0xf]
    %v231 = vld [vmem:[%s226 + $0x10] sm:$0xf]
    %v232 = vld [vmem:[%s226 + $0x14] sm:$0xf]
    %v233 = vld [vmem:[%s226 + $0x18] sm:$0xf]
    %v234 = vld [vmem:[%s226 + $0x1c] sm:$0xf]
    %v235 = vld [vmem:[%s226 + $0x20] sm:$0xf]
    %v236 = vld [vmem:[%s226 + $0x24] sm:$0xf]
    %v237 = vld [vmem:[%s226 + $0x28] sm:$0xf]
    %v238 = vld [vmem:[%s226 + $0x2c] sm:$0xf]
    %v239 = vld [vmem:[%s226 + $0x30] sm:$0xf]
    %v240 = vld [vmem:[%s226 + $0x34] sm:$0xf]
    %v241 = vld [vmem:[%s226 + $0x38] sm:$0xf]
    %v242 = vld [vmem:[%s226 + $0x3c] sm:$0xf]
    %s243 = scalar_lea.vmem %s4, 1
    %v244 = vld [vmem:[%s243] sm:$0x1]
    %v246 = vlaneseq
    %v247 = vshrl.u32 %v246, 7
    %v248 = vsub.s32 0, %v247
    %v249 = vrot.slane %v244, %v248
    %v267 = vunpack.c.l.b16 %v227
    %v268 = vunpack.c.l.b16 %v228
    %v269 = vunpack.c.l.b16 %v229
    %v270 = vunpack.c.l.b16 %v230
    %v271 = vunpack.c.l.b16 %v231
    %v272 = vunpack.c.l.b16 %v232
    %v273 = vunpack.c.l.b16 %v233
    %v274 = vunpack.c.l.b16 %v234
    %v275 = vunpack.c.l.b16 %v235
    %v276 = vunpack.c.l.b16 %v236
    %v277 = vunpack.c.l.b16 %v237
    %v278 = vunpack.c.l.b16 %v238
    %v279 = vunpack.c.l.b16 %v239
    %v280 = vunpack.c.l.b16 %v240
    %v281 = vunpack.c.l.b16 %v241
    %v282 = vunpack.c.l.b16 %v242
    %v283 = vpack.c.b16 %v268, %v267
    %v284 = vpack.c.b16 %v270, %v269
    %v285 = vpack.c.b16 %v272, %v271
    %v286 = vpack.c.b16 %v274, %v273
    %v287 = vpack.c.b16 %v276, %v275
    %v288 = vpack.c.b16 %v278, %v277
    %v289 = vpack.c.b16 %v280, %v279
    %v290 = vpack.c.b16 %v282, %v281
    %299 = vmatprep.subr.bf16.mxu0 0
    %300 = vmatpush1.bf16.msra.mxu0 %v283
    %301 = vmatprep.subr.bf16.mxu0 0
    %302 = vmatpush1.bf16.msra.mxu0 %v284
    %303 = vmatprep.subr.bf16.mxu0 0
    %304 = vmatpush1.bf16.msra.mxu0 %v285
    %305 = vmatprep.subr.bf16.mxu0 0
    %306 = vmatpush1.bf16.msra.mxu0 %v286
    %307 = vmatprep.subr.bf16.mxu0 0
    %308 = vmatpush1.bf16.msra.mxu0 %v287
    %309 = vmatprep.subr.bf16.mxu0 0
    %310 = vmatpush1.bf16.msra.mxu0 %v288
    %311 = vmatprep.subr.bf16.mxu0 0
    %312 = vmatpush1.bf16.msra.mxu0 %v289
    %313 = vmatprep.subr.bf16.mxu0 0
    %314 = vmatpush1.bf16.msra.mxu0 %v290
    %315 = vmatprep.subr.bf16.mxu0 0
    %316 = vmatpush1.bf16.msra.mxu0 0
    %317 = vmatprep.subr.bf16.mxu0 0
    %318 = vmatpush1.bf16.msra.mxu0 0
    %319 = vmatprep.subr.bf16.mxu0 0
    %320 = vmatpush1.bf16.msra.mxu0 0
    %321 = vmatprep.subr.bf16.mxu0 0
    %322 = vmatpush1.bf16.msra.mxu0 0
    %323 = vmatprep.subr.bf16.mxu0 0
    %324 = vmatpush1.bf16.msra.mxu0 0
    %325 = vmatprep.subr.bf16.mxu0 0
    %326 = vmatpush1.bf16.msra.mxu0 0
    %327 = vmatprep.subr.bf16.mxu0 0
    %328 = vmatpush1.bf16.msra.mxu0 0
    %329 = vmatprep.subr.bf16.mxu0 0
    %330 = vmatpush1.bf16.msra.mxu0 0
    %331 = vmatprep.mubr.bf16.mxu0 0
    %332 = vmatmul.mubr.bf16.gmra.mrb[0].mxu0 %v225
    %v333 = vpop.f32.mrb[0].mxu0
    %v334 = vadd.f32 %v249, %v333
    %v335 = vpop.f32.mrb[0].mxu0
    %v336 = vpop.f32.mrb[0].mxu0
    %v337 = vpop.f32.mrb[0].mxu0
    %338 = vdwg.mxu0
    %v339 = vmax.f32 %v334, 0.0
    %v340 = vpack.c.bf16 %v339, %v339
    %v341 = vld [vmem:[%s5] sm:$0xf]
    %v342 = vld [vmem:[%s5 + $0x4] sm:$0xf]
    %v343 = vld [vmem:[%s5 + $0x8] sm:$0xf]
    %v344 = vld [vmem:[%s5 + $0xc] sm:$0xf]
    %v345 = vld [vmem:[%s5 + $0x10] sm:$0xf]
    %v346 = vld [vmem:[%s5 + $0x14] sm:$0xf]
    %v347 = vld [vmem:[%s5 + $0x18] sm:$0xf]
    %v348 = vld [vmem:[%s5 + $0x1c] sm:$0xf]
    %v349 = vld [vmem:[%s5 + $0x20] sm:$0xf]
    %v350 = vld [vmem:[%s5 + $0x24] sm:$0xf]
    %v351 = vld [vmem:[%s5 + $0x28] sm:$0xf]
    %v352 = vld [vmem:[%s5 + $0x2c] sm:$0xf]
    %v353 = vld [vmem:[%s5 + $0x30] sm:$0xf]
    %v354 = vld [vmem:[%s5 + $0x34] sm:$0xf]
    %v355 = vld [vmem:[%s5 + $0x38] sm:$0xf]
    %v356 = vld [vmem:[%s5 + $0x3c] sm:$0xf]
    %v357 = vld [vmem:[%s6] sm:$0x1]
    %v359 = vlaneseq
    %v360 = vshrl.u32 %v359, 7
    %v361 = vsub.s32 0, %v360
    %v362 = vrot.slane %v357, %v361
    %v380 = vunpack.c.l.b16 %v341
    %v381 = vunpack.c.l.b16 %v342
    %v382 = vunpack.c.l.b16 %v343
    %v383 = vunpack.c.l.b16 %v344
    %v384 = vunpack.c.l.b16 %v345
    %v385 = vunpack.c.l.b16 %v346
    %v386 = vunpack.c.l.b16 %v347
    %v387 = vunpack.c.l.b16 %v348
    %v388 = vunpack.c.l.b16 %v349
    %v389 = vunpack.c.l.b16 %v350
    %v390 = vunpack.c.l.b16 %v351
    %v391 = vunpack.c.l.b16 %v352
    %v392 = vunpack.c.l.b16 %v353
    %v393 = vunpack.c.l.b16 %v354
    %v394 = vunpack.c.l.b16 %v355
    %v395 = vunpack.c.l.b16 %v356
    %v396 = vpack.c.b16 %v381, %v380
    %v397 = vpack.c.b16 %v383, %v382
    %v398 = vpack.c.b16 %v385, %v384
    %v399 = vpack.c.b16 %v387, %v386
    %v400 = vpack.c.b16 %v389, %v388
    %v401 = vpack.c.b16 %v391, %v390
    %v402 = vpack.c.b16 %v393, %v392
    %v403 = vpack.c.b16 %v395, %v394
    %412 = vmatprep.subr.bf16.mxu0 0
    %413 = vmatpush1.bf16.msra.mxu0 %v396
    %414 = vmatprep.subr.bf16.mxu0 0
    %415 = vmatpush1.bf16.msra.mxu0 %v397
    %416 = vmatprep.subr.bf16.mxu0 0
    %417 = vmatpush1.bf16.msra.mxu0 %v398
    %418 = vmatprep.subr.bf16.mxu0 0
    %419 = vmatpush1.bf16.msra.mxu0 %v399
    %420 = vmatprep.subr.bf16.mxu0 0
    %421 = vmatpush1.bf16.msra.mxu0 %v400
    %422 = vmatprep.subr.bf16.mxu0 0
    %423 = vmatpush1.bf16.msra.mxu0 %v401
    %424 = vmatprep.subr.bf16.mxu0 0
    %425 = vmatpush1.bf16.msra.mxu0 %v402
    %426 = vmatprep.subr.bf16.mxu0 0
    %427 = vmatpush1.bf16.msra.mxu0 %v403
    %428 = vmatprep.subr.bf16.mxu0 0
    %429 = vmatpush1.bf16.msra.mxu0 0
    %430 = vmatprep.subr.bf16.mxu0 0
    %431 = vmatpush1.bf16.msra.mxu0 0
    %432 = vmatprep.subr.bf16.mxu0 0
    %433 = vmatpush1.bf16.msra.mxu0 0
    %434 = vmatprep.subr.bf16.mxu0 0
    %435 = vmatpush1.bf16.msra.mxu0 0
    %436 = vmatprep.subr.bf16.mxu0 0
    %437 = vmatpush1.bf16.msra.mxu0 0
    %438 = vmatprep.subr.bf16.mxu0 0
    %439 = vmatpush1.bf16.msra.mxu0 0
    %440 = vmatprep.subr.bf16.mxu0 0
    %441 = vmatpush1.bf16.msra.mxu0 0
    %442 = vmatprep.subr.bf16.mxu0 0
    %443 = vmatpush1.bf16.msra.mxu0 0
    %444 = vmatprep.mubr.bf16.mxu0 0
    %445 = vmatmul.mubr.bf16.gmra.mrb[0].mxu0 %v340
    %v446 = vpop.f32.mrb[0].mxu0
    %v447 = vadd.f32 %v362, %v446
    %v448 = vpop.f32.mrb[0].mxu0
    %v449 = vpop.f32.mrb[0].mxu0
    %v450 = vpop.f32.mrb[0].mxu0
    %451 = vdwg.mxu0
    %452 = vst.msk [vmem:[#allocation5] sm:$0xff] %vm67, %v447
    // Predicated region
    $region34: #{tpu_custom_call.1} parent=1 // pred_check
      _
    $region35: #{tpu_custom_call.1} parent=1 // pred_check_branch
      %454 = sbr.rel (0) target = $region37
    $region36: #{tpu_custom_call.1} parent=1 // pred_region
      %s456 = ssub.s32 128, 128
      %457 = vsyncadd [#allocation4], %s456
      %s459 = sshll.u32 [#allocation5], 4
      %s460 = int_to_ptr.vmem [resolvable:$true] %s459
      %462 = dma.vmem_to_hbm [thread:$0]  %s460, 128, %s7, [#allocation4]
    $region37: #{tpu_custom_call.1} parent=1 // pred_fallthru
      _
    // Predicated region
    $region38: #{tpu_custom_call.1} parent=1 // pred_check
      _
    $region39: #{tpu_custom_call.1} parent=1 // pred_check_branch
      %464 = sbr.rel (0) target = $region41
    $region40: #{tpu_custom_call.1} parent=1 // pred_region
      %465 = dma.done [#allocation4], 128
    $region41: #{tpu_custom_call.1} parent=1 // pred_fallthru
      _
    %466 = vsyncpa [#allocation3], 1
    %467 = vsyncpa [#allocation4], 1

// kernel: tpu_custom_call.1
$region0: #{tpu_custom_call.1}
  #allocation0 [shape = 'u32[]', space=smem, size = 0x4, offset = 0x4, fixed_abs, tag = 'smem constant byte address 0x4 - core index']
  #allocation1 [shape = 'u32[144,128]{1,0:T(1,128)}', space=vmem, size = 0x12000, scoped, tag = 'internal scratch']
  %s0 = inlined_call_operand.vmem [shape: f32[8,32], index: 0, kind: input, shape index: {}]
  %s1 = inlined_call_operand.vmem [shape: bf16[32,128], index: 1, kind: input, shape index: {}]
  %s2 = inlined_call_operand.vmem [shape: f32[1,128], index: 2, kind: input, shape index: {}]
  %s3 = inlined_call_operand.hbm [shape: bf16[2,128,128], index: 3, kind: input, shape index: {}]
  %s4 = inlined_call_operand.vmem [shape: f32[2,1,128], index: 4, kind: input, shape index: {}]
  %s5 = inlined_call_operand.vmem [shape: bf16[128,32], index: 5, kind: input, shape index: {}]
  %s6 = inlined_call_operand.vmem [shape: f32[1,32], index: 6, kind: input, shape index: {}]
  %s7 = inlined_call_operand.hbm [shape: f32[8,32], index: 7, kind: output, shape index: {}]
  %s8 = sld [smem:[#allocation0]]
  $region42: #{tpu_custom_call.1} parent=0
    _
  %s10 = ssub.s32 1, %s8
  %s11 = scalar_select 0, %s10, %s8
  $region1: #{tpu_custom_call.1} parent=0
    #allocation2 [shape = 'u8[65536]{0}', space=vmem, size = 0x10000, scoped, tag = 'input window, operand 3, single buffered']
    #allocation3 [shape = 's32[1]{0}', space=sflag, size = 0x4, scoped, tag = 'scoped memory for tpu_custom_call.1']
    #allocation4 [shape = 's32[1]{0}', space=sflag, size = 0x4, scoped, tag = 'scoped memory for tpu_custom_call.1']
    #allocation5 [shape = 'u8[4096]{0}', space=vmem, size = 0x1000, scoped, tag = 'output window, operand 0, single buffered']
    %12 = vsyncpa [#allocation3], 0
    %13 = vsyncpa [#allocation4], 0
    // Predicated region
    $region2: #{tpu_custom_call.1} parent=1 // pred_check
      _
    $region3: #{tpu_custom_call.1} parent=1 // pred_check_branch
      %15 = sbr.rel (0) target = $region5
    $region4: #{tpu_custom_call.1} parent=1 // pred_region
      _
    $region5: #{tpu_custom_call.1} parent=1 // pred_fallthru
      _
    // Predicated region
    $region6: #{tpu_custom_call.1} parent=1 // pred_check
      _
    $region7: #{tpu_custom_call.1} parent=1 // pred_check_branch
      %17 = sbr.rel (0) target = $region9
    $region8: #{tpu_custom_call.1} parent=1 // pred_region
      _
    $region9: #{tpu_custom_call.1} parent=1 // pred_fallthru
      _
    // Predicated region
    $region10: #{tpu_custom_call.1} parent=1 // pred_check
      _
    $region11: #{tpu_custom_call.1} parent=1 // pred_check_branch
      %19 = sbr.rel (0) target = $region13
    $region12: #{tpu_custom_call.1} parent=1 // pred_region
      _
    $region13: #{tpu_custom_call.1} parent=1 // pred_fallthru
      _
    // Predicated region
    $region14: #{tpu_custom_call.1} parent=1 // pred_check
      _
    $region15: #{tpu_custom_call.1} parent=1 // pred_check_branch
      %21 = sbr.rel (0) target = $region17
    $region16: #{tpu_custom_call.1} parent=1 // pred_region
      %s23 = ssub.s32 2048, 2048
      %24 = vsyncadd [#allocation3], %s23
      %s25 = sshll.u32 [#allocation2], 4
      %s26 = int_to_ptr.vmem [resolvable:$true] %s25
      %31 = dma.hbm_to_vmem [thread:$0]  %s3, 2048, %s26, [#allocation3], 64, 64, 4
    $region17: #{tpu_custom_call.1} parent=1 // pred_fallthru
      _
    // Predicated region
    $region18: #{tpu_custom_call.1} parent=1 // pred_check
      _
    $region19: #{tpu_custom_call.1} parent=1 // pred_check_branch
      %33 = sbr.rel (0) target = $region21
    $region20: #{tpu_custom_call.1} parent=1 // pred_region
      _
    $region21: #{tpu_custom_call.1} parent=1 // pred_fallthru
      _
    // Predicated region
    $region22: #{tpu_custom_call.1} parent=1 // pred_check
      _
    $region23: #{tpu_custom_call.1} parent=1 // pred_check_branch
      %35 = sbr.rel (0) target = $region25
    $region24: #{tpu_custom_call.1} parent=1 // pred_region
      _
    $region25: #{tpu_custom_call.1} parent=1 // pred_fallthru
      _
    // Predicated region
    $region26: #{tpu_custom_call.1} parent=1 // pred_check
      _
    $region27: #{tpu_custom_call.1} parent=1 // pred_check_branch
      %37 = sbr.rel (0) target = $region29
    $region28: #{tpu_custom_call.1} parent=1 // pred_region
      _
    $region29: #{tpu_custom_call.1} parent=1 // pred_fallthru
      _
    // Predicated region
    $region30: #{tpu_custom_call.1} parent=1 // pred_check
      _
    $region31: #{tpu_custom_call.1} parent=1 // pred_check_branch
      %39 = sbr.rel (0) target = $region33
    $region32: #{tpu_custom_call.1} parent=1 // pred_region
      %40 = dma.done [#allocation3], 2048
    $region33: #{tpu_custom_call.1} parent=1 // pred_fallthru
      _
    %v42 = vld [vmem:[%s0] sm:$0xff]
    %v43 = vpack.c.bf16 %v42, %v42
    %v44 = vld [vmem:[%s1] sm:$0xf]
    %v45 = vld [vmem:[%s1 + $0x4] sm:$0xf]
    %v46 = vld [vmem:[%s1 + $0x8] sm:$0xf]
    %v47 = vld [vmem:[%s1 + $0xc] sm:$0xf]
    %v48 = vld [vmem:[%s2] sm:$0x1]
    %v50 = vlaneseq
    %v51 = vshrl.u32 %v50, 7
    %v52 = vsub.s32 0, %v51
    %v53 = vrot.slane %v48, %v52
    %v59 = vunpack.c.l.b16 %v44
    %v60 = vunpack.c.l.b16 %v45
    %v61 = vunpack.c.l.b16 %v46
    %v62 = vunpack.c.l.b16 %v47
    %v63 = vpack.c.b16 %v60, %v59
    %v64 = vpack.c.b16 %v62, %v61
    %vm67 = vcmask 261120
    %v69 = vsel %vm67, %v43, 0
    %71 = vmatprep.subr.bf16.mxu0 0
    %72 = vmatpush1.bf16.msra.mxu0 %v63
    %73 = vmatprep.subr.bf16.mxu0 0
    %74 = vmatpush1.bf16.msra.mxu0 %v64
    %75 = vmatprep.subr.bf16.mxu0 0
    %76 = vmatpush1.bf16.msra.mxu0 0
    %77 = vmatprep.subr.bf16.mxu0 0
    %78 = vmatpush1.bf16.msra.mxu0 0
    %79 = vmatprep.subr.bf16.mxu0 0
    %80 = vmatpush1.bf16.msra.mxu0 0
    %81 = vmatprep.subr.bf16.mxu0 0
    %82 = vmatpush1.bf16.msra.mxu0 0
    %83 = vmatprep.subr.bf16.mxu0 0
    %84 = vmatpush1.bf16.msra.mxu0 0
    %85 = vmatprep.subr.bf16.mxu0 0
    %86 = vmatpush1.bf16.msra.mxu0 0
    %87 = vmatprep.subr.bf16.mxu0 0
    %88 = vmatpush1.bf16.msra.mxu0 0
    %89 = vmatprep.subr.bf16.mxu0 0
    %90 = vmatpush1.bf16.msra.mxu0 0
    %91 = vmatprep.subr.bf16.mxu0 0
    %92 = vmatpush1.bf16.msra.mxu0 0
    %93 = vmatprep.subr.bf16.mxu0 0
    %94 = vmatpush1.bf16.msra.mxu0 0
    %95 = vmatprep.subr.bf16.mxu0 0
    %96 = vmatpush1.bf16.msra.mxu0 0
    %97 = vmatprep.subr.bf16.mxu0 0
    %98 = vmatpush1.bf16.msra.mxu0 0
    %99 = vmatprep.subr.bf16.mxu0 0
    %100 = vmatpush1.bf16.msra.mxu0 0
    %101 = vmatprep.subr.bf16.mxu0 0
    %102 = vmatpush1.bf16.msra.mxu0 0
    %103 = vmatprep.mubr.bf16.mxu0 0
    %104 = vmatmul.mubr.bf16.gmra.mrb[0].mxu0 %v69
    %v105 = vpop.f32.mrb[0].mxu0
    %v106 = vadd.f32 %v53, %v105
    %v107 = vpop.f32.mrb[0].mxu0
    %v108 = vpop.f32.mrb[0].mxu0
    %v109 = vpop.f32.mrb[0].mxu0
    %110 = vdwg.mxu0
    %v111 = vmax.f32 %v106, 0.0
    %v112 = vpack.c.bf16 %v111, %v111
    %v113 = vld [vmem:[#allocation2] sm:$0xf]
    %v114 = vld [vmem:[#allocation2 + $0x4] sm:$0xf]
    %v115 = vld [vmem:[#allocation2 + $0x8] sm:$0xf]
    %v116 = vld [vmem:[#allocation2 + $0xc] sm:$0xf]
    %v117 = vld [vmem:[#allocation2 + $0x10] sm:$0xf]
    %v118 = vld [vmem:[#allocation2 + $0x14] sm:$0xf]
    %v119 = vld [vmem:[#allocation2 + $0x18] sm:$0xf]
    %v120 = vld [vmem:[#allocation2 + $0x1c] sm:$0xf]
    %v121 = vld [vmem:[#allocation2 + $0x20] sm:$0xf]
    %v122 = vld [vmem:[#allocation2 + $0x24] sm:$0xf]
    %v123 = vld [vmem:[#allocation2 + $0x28] sm:$0xf]
    %v124 = vld [vmem:[#allocation2 + $0x2c] sm:$0xf]
    %v125 = vld [vmem:[#allocation2 + $0x30] sm:$0xf]
    %v126 = vld [vmem:[#allocation2 + $0x34] sm:$0xf]
    %v127 = vld [vmem:[#allocation2 + $0x38] sm:$0xf]
    %v128 = vld [vmem:[#allocation2 + $0x3c] sm:$0xf]
    %v129 = vld [vmem:[%s4] sm:$0x1]
    %v131 = vlaneseq
    %v132 = vshrl.u32 %v131, 7
    %v133 = vsub.s32 0, %v132
    %v134 = vrot.slane %v129, %v133
    %v152 = vunpack.c.l.b16 %v113
    %v153 = vunpack.c.l.b16 %v114
    %v154 = vunpack.c.l.b16 %v115
    %v155 = vunpack.c.l.b16 %v116
    %v156 = vunpack.c.l.b16 %v117
    %v157 = vunpack.c.l.b16 %v118
    %v158 = vunpack.c.l.b16 %v119
    %v159 = vunpack.c.l.b16 %v120
    %v160 = vunpack.c.l.b16 %v121
    %v161 = vunpack.c.l.b16 %v122
    %v162 = vunpack.c.l.b16 %v123
    %v163 = vunpack.c.l.b16 %v124
    %v164 = vunpack.c.l.b16 %v125
    %v165 = vunpack.c.l.b16 %v126
    %v166 = vunpack.c.l.b16 %v127
    %v167 = vunpack.c.l.b16 %v128
    %v168 = vpack.c.b16 %v153, %v152
    %v169 = vpack.c.b16 %v155, %v154
    %v170 = vpack.c.b16 %v157, %v156
    %v171 = vpack.c.b16 %v159, %v158
    %v172 = vpack.c.b16 %v161, %v160
    %v173 = vpack.c.b16 %v163, %v162
    %v174 = vpack.c.b16 %v165, %v164
    %v175 = vpack.c.b16 %v167, %v166
    %184 = vmatprep.subr.bf16.mxu0 0
    %185 = vmatpush1.bf16.msra.mxu0 %v168
    %186 = vmatprep.subr.bf16.mxu0 0
    %187 = vmatpush1.bf16.msra.mxu0 %v169
    %188 = vmatprep.subr.bf16.mxu0 0
    %189 = vmatpush1.bf16.msra.mxu0 %v170
    %190 = vmatprep.subr.bf16.mxu0 0
    %191 = vmatpush1.bf16.msra.mxu0 %v171
    %192 = vmatprep.subr.bf16.mxu0 0
    %193 = vmatpush1.bf16.msra.mxu0 %v172
    %194 = vmatprep.subr.bf16.mxu0 0
    %195 = vmatpush1.bf16.msra.mxu0 %v173
    %196 = vmatprep.subr.bf16.mxu0 0
    %197 = vmatpush1.bf16.msra.mxu0 %v174
    %198 = vmatprep.subr.bf16.mxu0 0
    %199 = vmatpush1.bf16.msra.mxu0 %v175
    %200 = vmatprep.subr.bf16.mxu0 0
    %201 = vmatpush1.bf16.msra.mxu0 0
    %202 = vmatprep.subr.bf16.mxu0 0
    %203 = vmatpush1.bf16.msra.mxu0 0
    %204 = vmatprep.subr.bf16.mxu0 0
    %205 = vmatpush1.bf16.msra.mxu0 0
    %206 = vmatprep.subr.bf16.mxu0 0
    %207 = vmatpush1.bf16.msra.mxu0 0
    %208 = vmatprep.subr.bf16.mxu0 0
    %209 = vmatpush1.bf16.msra.mxu0 0
    %210 = vmatprep.subr.bf16.mxu0 0
    %211 = vmatpush1.bf16.msra.mxu0 0
    %212 = vmatprep.subr.bf16.mxu0 0
    %213 = vmatpush1.bf16.msra.mxu0 0
    %214 = vmatprep.subr.bf16.mxu0 0
    %215 = vmatpush1.bf16.msra.mxu0 0
    %216 = vmatprep.mubr.bf16.mxu0 0
    %217 = vmatmul.mubr.bf16.gmra.mrb[0].mxu0 %v112
    %v218 = vpop.f32.mrb[0].mxu0
    %v219 = vadd.f32 %v134, %v218
    %v220 = vpop.f32.mrb[0].mxu0
    %v221 = vpop.f32.mrb[0].mxu0
    %v222 = vpop.f32.mrb[0].mxu0
    %223 = vdwg.mxu0
    %v224 = vmax.f32 %v219, 0.0
    %v225 = vpack.c.bf16 %v224, %v224
    %s226 = scalar_lea.vmem [#allocation2], 64
    %v227 = vld [vmem:[%s226] sm:$0xf]
    %v228 = vld [vmem:[%s226 + $0x4] sm:$0xf]
    %v229 = vld [vmem:[%s226 + $0x8] sm:$0xf]
    %v230 = vld [vmem:[%s226 + $0xc] sm:$0xf]
    %v231 = vld [vmem:[%s226 + $0x10] sm:$0xf]
    %v232 = vld [vmem:[%s226 + $0x14] sm:$0xf]
    %v233 = vld [vmem:[%s226 + $0x18] sm:$0xf]
    %v234 = vld [vmem:[%s226 + $0x1c] sm:$0xf]
    %v235 = vld [vmem:[%s226 + $0x20] sm:$0xf]
    %v236 = vld [vmem:[%s226 + $0x24] sm:$0xf]
    %v237 = vld [vmem:[%s226 + $0x28] sm:$0xf]
    %v238 = vld [vmem:[%s226 + $0x2c] sm:$0xf]
    %v239 = vld [vmem:[%s226 + $0x30] sm:$0xf]
    %v240 = vld [vmem:[%s226 + $0x34] sm:$0xf]
    %v241 = vld [vmem:[%s226 + $0x38] sm:$0xf]
    %v242 = vld [vmem:[%s226 + $0x3c] sm:$0xf]
    %s243 = scalar_lea.vmem %s4, 1
    %v244 = vld [vmem:[%s243] sm:$0x1]
    %v246 = vlaneseq
    %v247 = vshrl.u32 %v246, 7
    %v248 = vsub.s32 0, %v247
    %v249 = vrot.slane %v244, %v248
    %v267 = vunpack.c.l.b16 %v227
    %v268 = vunpack.c.l.b16 %v228
    %v269 = vunpack.c.l.b16 %v229
    %v270 = vunpack.c.l.b16 %v230
    %v271 = vunpack.c.l.b16 %v231
    %v272 = vunpack.c.l.b16 %v232
    %v273 = vunpack.c.l.b16 %v233
    %v274 = vunpack.c.l.b16 %v234
    %v275 = vunpack.c.l.b16 %v235
    %v276 = vunpack.c.l.b16 %v236
    %v277 = vunpack.c.l.b16 %v237
    %v278 = vunpack.c.l.b16 %v238
    %v279 = vunpack.c.l.b16 %v239
    %v280 = vunpack.c.l.b16 %v240
    %v281 = vunpack.c.l.b16 %v241
    %v282 = vunpack.c.l.b16 %v242
    %v283 = vpack.c.b16 %v268, %v267
    %v284 = vpack.c.b16 %v270, %v269
    %v285 = vpack.c.b16 %v272, %v271
    %v286 = vpack.c.b16 %v274, %v273
    %v287 = vpack.c.b16 %v276, %v275
    %v288 = vpack.c.b16 %v278, %v277
    %v289 = vpack.c.b16 %v280, %v279
    %v290 = vpack.c.b16 %v282, %v281
    %299 = vmatprep.subr.bf16.mxu0 0
    %300 = vmatpush1.bf16.msra.mxu0 %v283
    %301 = vmatprep.subr.bf16.mxu0 0
    %302 = vmatpush1.bf16.msra.mxu0 %v284
    %303 = vmatprep.subr.bf16.mxu0 0
    %304 = vmatpush1.bf16.msra.mxu0 %v285
    %305 = vmatprep.subr.bf16.mxu0 0
    %306 = vmatpush1.bf16.msra.mxu0 %v286
    %307 = vmatprep.subr.bf16.mxu0 0
    %308 = vmatpush1.bf16.msra.mxu0 %v287
    %309 = vmatprep.subr.bf16.mxu0 0
    %310 = vmatpush1.bf16.msra.mxu0 %v288
    %311 = vmatprep.subr.bf16.mxu0 0
    %312 = vmatpush1.bf16.msra.mxu0 %v289
    %313 = vmatprep.subr.bf16.mxu0 0
    %314 = vmatpush1.bf16.msra.mxu0 %v290
    %315 = vmatprep.subr.bf16.mxu0 0
    %316 = vmatpush1.bf16.msra.mxu0 0
    %317 = vmatprep.subr.bf16.mxu0 0
    %318 = vmatpush1.bf16.msra.mxu0 0
    %319 = vmatprep.subr.bf16.mxu0 0
    %320 = vmatpush1.bf16.msra.mxu0 0
    %321 = vmatprep.subr.bf16.mxu0 0
    %322 = vmatpush1.bf16.msra.mxu0 0
    %323 = vmatprep.subr.bf16.mxu0 0
    %324 = vmatpush1.bf16.msra.mxu0 0
    %325 = vmatprep.subr.bf16.mxu0 0
    %326 = vmatpush1.bf16.msra.mxu0 0
    %327 = vmatprep.subr.bf16.mxu0 0
    %328 = vmatpush1.bf16.msra.mxu0 0
    %329 = vmatprep.subr.bf16.mxu0 0
    %330 = vmatpush1.bf16.msra.mxu0 0
    %331 = vmatprep.mubr.bf16.mxu0 0
    %332 = vmatmul.mubr.bf16.gmra.mrb[0].mxu0 %v225
    %v333 = vpop.f32.mrb[0].mxu0
    %v334 = vadd.f32 %v249, %v333
    %v335 = vpop.f32.mrb[0].mxu0
    %v336 = vpop.f32.mrb[0].mxu0
    %v337 = vpop.f32.mrb[0].mxu0
    %338 = vdwg.mxu0
    %v339 = vmax.f32 %v334, 0.0
    %v340 = vpack.c.bf16 %v339, %v339
    %v341 = vld [vmem:[%s5] sm:$0xf]
    %v342 = vld [vmem:[%s5 + $0x4] sm:$0xf]
    %v343 = vld [vmem:[%s5 + $0x8] sm:$0xf]
    %v344 = vld [vmem:[%s5 + $0xc] sm:$0xf]
    %v345 = vld [vmem:[%s5 + $0x10] sm:$0xf]
    %v346 = vld [vmem:[%s5 + $0x14] sm:$0xf]
    %v347 = vld [vmem:[%s5 + $0x18] sm:$0xf]
    %v348 = vld [vmem:[%s5 + $0x1c] sm:$0xf]
    %v349 = vld [vmem:[%s5 + $0x20] sm:$0xf]
    %v350 = vld [vmem:[%s5 + $0x24] sm:$0xf]
    %v351 = vld [vmem:[%s5 + $0x28] sm:$0xf]
    %v352 = vld [vmem:[%s5 + $0x2c] sm:$0xf]
    %v353 = vld [vmem:[%s5 + $0x30] sm:$0xf]
    %v354 = vld [vmem:[%s5 + $0x34] sm:$0xf]
    %v355 = vld [vmem:[%s5 + $0x38] sm:$0xf]
    %v356 = vld [vmem:[%s5 + $0x3c] sm:$0xf]
    %v357 = vld [vmem:[%s6] sm:$0x1]
    %v359 = vlaneseq
    %v360 = vshrl.u32 %v359, 7
    %v361 = vsub.s32 0, %v360
    %v362 = vrot.slane %v357, %v361
    %v380 = vunpack.c.l.b16 %v341
    %v381 = vunpack.c.l.b16 %v342
    %v382 = vunpack.c.l.b16 %v343
    %v383 = vunpack.c.l.b16 %v344
    %v384 = vunpack.c.l.b16 %v345
    %v385 = vunpack.c.l.b16 %v346
    %v386 = vunpack.c.l.b16 %v347
    %v387 = vunpack.c.l.b16 %v348
    %v388 = vunpack.c.l.b16 %v349
    %v389 = vunpack.c.l.b16 %v350
    %v390 = vunpack.c.l.b16 %v351
    %v391 = vunpack.c.l.b16 %v352
    %v392 = vunpack.c.l.b16 %v353
    %v393 = vunpack.c.l.b16 %v354
    %v394 = vunpack.c.l.b16 %v355
    %v395 = vunpack.c.l.b16 %v356
    %v396 = vpack.c.b16 %v381, %v380
    %v397 = vpack.c.b16 %v383, %v382
    %v398 = vpack.c.b16 %v385, %v384
    %v399 = vpack.c.b16 %v387, %v386
    %v400 = vpack.c.b16 %v389, %v388
    %v401 = vpack.c.b16 %v391, %v390
    %v402 = vpack.c.b16 %v393, %v392
    %v403 = vpack.c.b16 %v395, %v394
    %412 = vmatprep.subr.bf16.mxu0 0
    %413 = vmatpush1.bf16.msra.mxu0 %v396
    %414 = vmatprep.subr.bf16.mxu0 0
    %415 = vmatpush1.bf16.msra.mxu0 %v397
    %416 = vmatprep.subr.bf16.mxu0 0
    %417 = vmatpush1.bf16.msra.mxu0 %v398
    %418 = vmatprep.subr.bf16.mxu0 0
    %419 = vmatpush1.bf16.msra.mxu0 %v399
    %420 = vmatprep.subr.bf16.mxu0 0
    %421 = vmatpush1.bf16.msra.mxu0 %v400
    %422 = vmatprep.subr.bf16.mxu0 0
    %423 = vmatpush1.bf16.msra.mxu0 %v401
    %424 = vmatprep.subr.bf16.mxu0 0
    %425 = vmatpush1.bf16.msra.mxu0 %v402
    %426 = vmatprep.subr.bf16.mxu0 0
    %427 = vmatpush1.bf16.msra.mxu0 %v403
    %428 = vmatprep.subr.bf16.mxu0 0
    %429 = vmatpush1.bf16.msra.mxu0 0
    %430 = vmatprep.subr.bf16.mxu0 0
    %431 = vmatpush1.bf16.msra.mxu0 0
    %432 = vmatprep.subr.bf16.mxu0 0
    %433 = vmatpush1.bf16.msra.mxu0 0
    %434 = vmatprep.subr.bf16.mxu0 0
    %435 = vmatpush1.bf16.msra.mxu0 0
    %436 = vmatprep.subr.bf16.mxu0 0
    %437 = vmatpush1.bf16.msra.mxu0 0
    %438 = vmatprep.subr.bf16.mxu0 0
    %439 = vmatpush1.bf16.msra.mxu0 0
    %440 = vmatprep.subr.bf16.mxu0 0
    %441 = vmatpush1.bf16.msra.mxu0 0
    %442 = vmatprep.subr.bf16.mxu0 0
    %443 = vmatpush1.bf16.msra.mxu0 0
    %444 = vmatprep.mubr.bf16.mxu0 0
    %445 = vmatmul.mubr.bf16.gmra.mrb[0].mxu0 %v340
    %v446 = vpop.f32.mrb[0].mxu0
    %v447 = vadd.f32 %v362, %v446
    %v448 = vpop.f32.mrb[0].mxu0
    %v449 = vpop.f32.mrb[0].mxu0
    %v450 = vpop.f32.mrb[0].mxu0
    %451 = vdwg.mxu0
    %452 = vst.msk [vmem:[#allocation5] sm:$0xff] %vm67, %v447
    // Predicated region
    $region34: #{tpu_custom_call.1} parent=1 // pred_check
      _
    $region35: #{tpu_custom_call.1} parent=1 // pred_check_branch
      %454 = sbr.rel (0) target = $region37
    $region36: #{tpu_custom_call.1} parent=1 // pred_region
      %s456 = ssub.s32 128, 128
      %457 = vsyncadd [#allocation4], %s456
      %s459 = sshll.u32 [#allocation5], 4
      %s460 = int_to_ptr.vmem [resolvable:$true] %s459
      %462 = dma.vmem_to_hbm [thread:$0]  %s460, 128, %s7, [#allocation4]
    $region37: #{tpu_custom_call.1} parent=1 // pred_fallthru
      _
    // Predicated region
    $region38: #{tpu_custom_call.1} parent=1 // pred_check
      _
    $region39: #{tpu_custom_call.1} parent=1 // pred_check_branch
      %464 = sbr.rel (0) target = $region41
    $region40: #{tpu_custom_call.1} parent=1 // pred_region
      %465 = dma.done [#allocation4], 128
    $region41: #{tpu_custom_call.1} parent=1 // pred_fallthru
      _
    %466 = vsyncpa [#allocation3], 1
    %467 = vsyncpa [#allocation4], 1

</llo_original>
